<compile_context>
chip_gen: v7x
topology: tpu7x:2x2x1
jax: 0.10.0
libtpu: 0.0.40
codegen_flags: <defaults>
</compile_context>

<pallas_src>
import numpy as np
import jax
import jax.numpy as jnp
from jax import lax
from jax.experimental import pallas as pl
from jax.experimental.pallas import tpu as pltpu


def _make_attention_kernel(n_valid: int, n_pad: int):
    """Single-pass softmax over the source axis (matches torch softmax(dim=1))."""
    needs_mask = n_valid != n_pad

    def kernel(y_ref, xsrc_ref, xres_ref, wv_ref, o_ref):
        x_src = xsrc_ref[0]                                             # (C, n_pad) bf16, resident
        # s[n, m] = sum_c x[c, n] * y[c, m] — contract dim 0 of both operands (no transpose).
        s = lax.dot_general(x_src, y_ref[0],
                            dimension_numbers=(((0,), (0,)), ((), ())),
                            preferred_element_type=jnp.float32)         # (n_pad, Tm) f32

        if needs_mask:
            # Narrow (n_pad, 1) iota/compare; only the -1e30 bias add touches the full tile.
            valid = lax.broadcasted_iota(jnp.int32, (n_pad, 1), 0) < n_valid
            s = s + jnp.where(valid, 0.0, -1e30).astype(jnp.float32)

        # Single-pass softmax over the source axis (axis 0), all in f32.
        m = jnp.max(s, axis=0, keepdims=True)                           # (1, Tm)
        p = jnp.exp(s - m)                                              # f32 exp (v5e-safe)
        l = jnp.sum(p, axis=0, keepdims=True)                           # (1, Tm)

        # ctx[c, m] = sum_n x[c, n] * p[n, m]; value projection applied once afterwards.
        ctx = jnp.dot(x_src, p.astype(jnp.bfloat16),
                      preferred_element_type=jnp.float32)               # (C, Tm) f32
        ctx = (ctx * pl.reciprocal(l, approx=True)).astype(jnp.bfloat16)  # EUP recip, not divide
        attn = jnp.dot(wv_ref[...], ctx, preferred_element_type=jnp.float32)
        o_ref[0] = (attn + xres_ref[0]).astype(o_ref.dtype)             # residual in f32

    return kernel


def self_attention_pallas(x_nchw, wq, wk, wv, gamma, *, block_m=512):
    """x_nchw: (B, C, H, W) f32. wq/wk: (C//8, C), wv: (C, C), gamma: scalar-shaped array."""
    B, C, H, W = x_nchw.shape
    N = H * W
    x = x_nchw.reshape(B, C, N)

    # Fold the tiny Cq = C//8 projections into one CxC matrix (f32 on the host for accuracy);
    # fold gamma into Wv so the kernel sees a single (C, C) bf16 value projection.
    a = jnp.dot(wq.T, wk)                                              # (C, C) f32
    wv_g = (jnp.reshape(gamma, ()) * wv).astype(jnp.bfloat16)          # (C, C) bf16

    LANE = 128
    n_pad = ((N + LANE - 1) // LANE) * LANE
    pad = n_pad - N
    x_p = jnp.pad(x, ((0, 0), (0, 0), (0, pad))) if pad else x         # f32 (residual path)
    x_bf = x_p.astype(jnp.bfloat16)                                    # bf16 (MXU source stream)
    # Query-side projection hoisted out of the kernel: y[b,:,m] = A @ x[b,:,m].
    y_bf = jnp.einsum('cd,bdn->bcn', a, x_p).astype(jnp.bfloat16)      # (B, C, n_pad) bf16

    # Query-tile size: multiple of 128, divides n_pad, and keeps the (n_pad, Tm) f32 score +
    # bf16 p intermediates within a conservative VMEM budget.
    k = n_pad // LANE
    score_budget = 8 * 1024 * 1024
    bm_units = max(1, min(block_m // LANE, score_budget // (6 * n_pad * LANE), k))
    while k % bm_units:
        bm_units -= 1
    if B == 1 and bm_units == k and k > 1:
        # Keep >=2 parallel blocks so a dual-TensorCore chip (v7x) does not idle one core.
        bm_units = next(d for d in range(k // 2, 0, -1) if k % d == 0)
    bm = bm_units * LANE
    num_m = k // bm_units

    # VMEM budget (double-buffered inputs + score/p intermediates); v5e's default scoped
    # limit is only 16 MiB, so raise it explicitly (capped below v7x's 64 MiB physical).
    vmem_est = (
        n_pad * bm * 6                      # (n_pad, Tm) f32 score + bf16 p
        + 2 * C * n_pad * 2                 # resident bf16 source (double-buffered)
        + 2 * C * bm * (2 + 4 + 4)          # y bf16 + residual f32 + output f32 tiles
        + 4 * C * C * 2                     # folded value weight
        + (4 << 20)                         # headroom for compiler temporaries
    )
    vmem_limit = int(min(max(vmem_est, 32 * 1024 * 1024), 64 * 1024 * 1024))

    kernel = _make_attention_kernel(N, n_pad)

    out = pl.pallas_call(
        kernel,
        out_shape=jax.ShapeDtypeStruct((B, C, n_pad), x.dtype),
        grid_spec=pltpu.PrefetchScalarGridSpec(
            num_scalar_prefetch=0,
            grid=(B, num_m),
            in_specs=[
                pl.BlockSpec((1, C, bm), lambda b, i: (b, 0, i)),       # y = A @ x (query tiles)
                pl.BlockSpec((1, C, n_pad), lambda b, i: (b, 0, 0)),    # bf16 source, resident per b
                pl.BlockSpec((1, C, bm), lambda b, i: (b, 0, i)),       # f32 x for the residual
                pl.BlockSpec((C, C), lambda b, i: (0, 0)),              # gamma * Wv (resident)
            ],
            out_specs=pl.BlockSpec((1, C, bm), lambda b, i: (b, 0, i)),
        ),
        compiler_params=pltpu.CompilerParams(
            dimension_semantics=("parallel", "parallel"),
            vmem_limit_bytes=vmem_limit),
    )(y_bf, x_bf, x_p, wv_g)

    return out[:, :, :N].reshape(B, C, H, W)


def _kaiming_spectral_weight(key, out_ch, in_ch):
    """Kaiming-normal (fan_in, gain=sqrt(2)) 1x1 Conv1d weight with exact spectral normalization."""
    std = np.sqrt(2.0 / in_ch)
    w = std * jax.random.normal(key, (out_ch, in_ch), dtype=jnp.float32)
    w_np = np.asarray(w)
    sigma = np.linalg.norm(w_np, 2)  # largest singular value
    # TODO(synk): PyTorch spectral_norm uses one-step power iteration with a persistent random u
    # vector; here we normalize by the exact top singular value (its fixed point) at init.
    return jnp.asarray(w_np / sigma, dtype=jnp.float32)


def _reference_forward(x_nchw, wq, wk, wv, gamma):
    B, C, H, W = x_nchw.shape
    x = x_nchw.reshape(B, C, H * W)
    f = jnp.einsum('oc,bcn->bon', wq, x)
    g = jnp.einsum('oc,bcn->bon', wk, x)
    h = jnp.einsum('oc,bcn->bon', wv, x)
    s = jnp.einsum('bon,bom->bnm', f, g)          # bmm(f^T, g)
    beta = jax.nn.softmax(s, axis=1)              # softmax over dim=1 (the source axis)
    o = jnp.reshape(gamma, ()) * jnp.einsum('bcn,bnm->bcm', h, beta) + x
    return o.reshape(B, C, H, W)


if __name__ == "__main__":
    key = jax.random.PRNGKey(0)
    kx, kq, kk, kv, kx2 = jax.random.split(key, 5)

    B, C = 2, 32            # n_channels=32 -> query/key channels = 4
    Cq = C // 8
    wq = _kaiming_spectral_weight(kq, Cq, C)
    wk = _kaiming_spectral_weight(kk, Cq, C)
    wv = _kaiming_spectral_weight(kv, C, C)

    # (16,16): N=256 is lane-dense (no mask path, 2 query tiles worth of lanes).
    # (12,12): N=144 exercises pad-to-128-multiple + the additive pad-bias path.
    for (H, W), kxi in (((16, 16), kx), ((12, 12), kx2)):
        x = jax.random.normal(kxi, (B, C, H, W), dtype=jnp.float32)
        for gamma_val in (0.0, 0.7):   # gamma=0 is the module's faithful init; 0.7 exercises attention
            gamma = jnp.full((1,), gamma_val, dtype=jnp.float32)
            out = self_attention_pallas(x, wq, wk, wv, gamma)
            out = jax.block_until_ready(out)
            ref = _reference_forward(x, wq, wk, wv, gamma)
            # bf16 MXU operands -> loosened tolerance (softmax math stays f32).
            np.testing.assert_allclose(np.asarray(out), np.asarray(ref),
                                       rtol=5e-2, atol=5e-2)

    print("KERNEL_OK")
</pallas_src>

<mosaic_0001>
module attributes {stable_mosaic.version = 11 : i64} {
  func.func @kernel(%arg0: i32, %arg1: i32, %arg2: memref<1x32x256xbf16, #tpu.memory_space<vmem>>, %arg3: memref<1x32x256xbf16, #tpu.memory_space<vmem>>, %arg4: memref<1x32x256xf32, #tpu.memory_space<vmem>>, %arg5: memref<32x32xbf16, #tpu.memory_space<vmem>>, %arg6: memref<1x32x256xf32, #tpu.memory_space<vmem>>) attributes {dimension_semantics = [#tpu.dimension_semantics<parallel>, #tpu.dimension_semantics<parallel>], iteration_bounds = array<i64: 2, 1>, scalar_prefetch = 0 : i64, scratch_operands = 0 : i64, tpu.core_type = #tpu.core_type<tc>, window_params = [{transform_indices = @transform_0, window_bounds = array<i64: 1, 32, 256>}, {transform_indices = @transform_1, window_bounds = array<i64: 1, 32, 256>}, {transform_indices = @transform_2, window_bounds = array<i64: 1, 32, 256>}, {pipeline_mode = #tpu.pipeline_mode<synchronous>, transform_indices = @transform_3, window_bounds = array<i64: 32, 32>}, {transform_indices = @transform_4, window_bounds = array<i64: 1, 32, 256>}]} {
    %c0 = arith.constant 0 : index
    %c0_0 = arith.constant 0 : index
    %c0_1 = arith.constant 0 : index
    %0 = vector.load %arg3[%c0, %c0_0, %c0_1] : memref<1x32x256xbf16, #tpu.memory_space<vmem>>, vector<1x32x256xbf16>
    %1 = vector.shape_cast %0 : vector<1x32x256xbf16> to vector<32x256xbf16>
    %c0_2 = arith.constant 0 : index
    %c0_3 = arith.constant 0 : index
    %c0_4 = arith.constant 0 : index
    %2 = vector.load %arg2[%c0_2, %c0_3, %c0_4] : memref<1x32x256xbf16, #tpu.memory_space<vmem>>, vector<1x32x256xbf16>
    %3 = vector.shape_cast %2 : vector<1x32x256xbf16> to vector<32x256xbf16>
    %cst = arith.constant dense<0.000000e+00> : vector<256x256xf32>
    %4 = tpu.matmul %1, %3, %cst {dimension_numbers = #tpu.dot_dimension_numbers<[0], [0], [1], [1], [0, 1, 1, 1], [], []>} : vector<32x256xbf16>, vector<32x256xbf16>, vector<256x256xf32> -> vector<256x256xf32>
    %cst_5 = arith.constant dense<0xFF800000> : vector<256xf32>
    %5 = vector.multi_reduction <maximumf>, %4, %cst_5 [0] : vector<256x256xf32> to vector<256xf32>
    %6 = vector.shape_cast %5 : vector<256xf32> to vector<1x256xf32>
    %7 = vector.broadcast %6 : vector<1x256xf32> to vector<256x256xf32>
    %8 = arith.subf %4, %7 : vector<256x256xf32>
    %9 = math.exp %8 : vector<256x256xf32>
    %cst_6 = arith.constant dense<0.000000e+00> : vector<256xf32>
    %10 = vector.multi_reduction <add>, %9, %cst_6 [0] : vector<256x256xf32> to vector<256xf32>
    %11 = vector.shape_cast %10 : vector<256xf32> to vector<1x256xf32>
    %12 = arith.truncf %9 : vector<256x256xf32> to vector<256x256xbf16>
    %cst_7 = arith.constant dense<0.000000e+00> : vector<32x256xf32>
    %13 = tpu.matmul %1, %12, %cst_7 {dimension_numbers = #tpu.dot_dimension_numbers<[1], [0], [0], [1], [0, 0, 1, 1], [], []>} : vector<32x256xbf16>, vector<256x256xbf16>, vector<32x256xf32> -> vector<32x256xf32>
    %14 = tpu.reciprocal %11 {approx = true} : vector<1x256xf32> -> vector<1x256xf32>
    %15 = vector.broadcast %14 : vector<1x256xf32> to vector<32x256xf32>
    %16 = arith.mulf %13, %15 : vector<32x256xf32>
    %17 = arith.truncf %16 : vector<32x256xf32> to vector<32x256xbf16>
    %c0_8 = arith.constant 0 : index
    %c0_9 = arith.constant 0 : index
    %18 = vector.load %arg5[%c0_8, %c0_9] : memref<32x32xbf16, #tpu.memory_space<vmem>>, vector<32x32xbf16>
    %cst_10 = arith.constant dense<0.000000e+00> : vector<32x256xf32>
    %19 = tpu.matmul %18, %17, %cst_10 {dimension_numbers = #tpu.dot_dimension_numbers<[1], [0], [0], [1], [0, 0, 1, 1], [], []>} : vector<32x32xbf16>, vector<32x256xbf16>, vector<32x256xf32> -> vector<32x256xf32>
    %c0_11 = arith.constant 0 : index
    %c0_12 = arith.constant 0 : index
    %c0_13 = arith.constant 0 : index
    %20 = vector.load %arg4[%c0_11, %c0_12, %c0_13] : memref<1x32x256xf32, #tpu.memory_space<vmem>>, vector<1x32x256xf32>
    %21 = vector.shape_cast %20 : vector<1x32x256xf32> to vector<32x256xf32>
    %22 = arith.addf %19, %21 : vector<32x256xf32>
    %c0_14 = arith.constant 0 : index
    %c0_15 = arith.constant 0 : index
    %c0_16 = arith.constant 0 : index
    %23 = vector.load %arg6[%c0_14, %c0_15, %c0_16] : memref<1x32x256xf32, #tpu.memory_space<vmem>>, vector<1x32x256xf32>
    %24 = vector.shape_cast %23 : vector<1x32x256xf32> to vector<32x256xf32>
    %25 = vector.shape_cast %22 : vector<32x256xf32> to vector<1x32x256xf32>
    tpu.vector_store %arg6[%c0_14, %c0_15, %c0_16], %25 {strides = array<i32>} : memref<1x32x256xf32, #tpu.memory_space<vmem>>, vector<1x32x256xf32>,
    return
  }
  func.func @transform_0(%arg0: i32, %arg1: i32) -> (i32, i32, i32) {
    %c0_i32 = arith.constant 0 : i32
    %c0_i32_0 = arith.constant 0 : i32
    return %arg0, %c0_i32, %arg1 : i32, i32, i32
  }
  func.func @transform_1(%arg0: i32, %arg1: i32) -> (i32, i32, i32) {
    %c0_i32 = arith.constant 0 : i32
    %c0_i32_0 = arith.constant 0 : i32
    %c0_i32_1 = arith.constant 0 : i32
    return %arg0, %c0_i32, %c0_i32_0 : i32, i32, i32
  }
  func.func @transform_2(%arg0: i32, %arg1: i32) -> (i32, i32, i32) {
    %c0_i32 = arith.constant 0 : i32
    %c0_i32_0 = arith.constant 0 : i32
    return %arg0, %c0_i32, %arg1 : i32, i32, i32
  }
  func.func @transform_3(%arg0: i32, %arg1: i32) -> (i32, i32) {
    %c0_i32 = arith.constant 0 : i32
    %c0_i32_0 = arith.constant 0 : i32
    %c0_i32_1 = arith.constant 0 : i32
    return %c0_i32, %c0_i32_0 : i32, i32
  }
  func.func @transform_4(%arg0: i32, %arg1: i32) -> (i32, i32, i32) {
    %c0_i32 = arith.constant 0 : i32
    %c0_i32_0 = arith.constant 0 : i32
    return %arg0, %c0_i32, %arg1 : i32, i32, i32
  }
}

</mosaic_0001>

<llo_original>
// kernel: tpu_custom_call.1
$region0: #{tpu_custom_call.1}
  #allocation0 [shape = 'u32[]', space=smem, size = 0x4, offset = 0x4, fixed_abs, tag = 'smem constant byte address 0x4 - core index']
  #allocation1 [shape = 'u32[144,128]{1,0:T(1,128)}', space=vmem, size = 0x12000, scoped, tag = 'internal scratch']
  %s0 = inlined_call_operand.hbm [shape: bf16[2,32,256], index: 0, kind: input, shape index: {}]
  %s1 = inlined_call_operand.hbm [shape: bf16[2,32,256], index: 1, kind: input, shape index: {}]
  %s2 = inlined_call_operand.hbm [shape: f32[2,32,256], index: 2, kind: input, shape index: {}]
  %s3 = inlined_call_operand.hbm [shape: bf16[32,32], index: 3, kind: input, shape index: {}]
  %s4 = inlined_call_operand.hbm [shape: f32[2,32,256], index: 4, kind: output, shape index: {}]
  %s5 = sld [smem:[#allocation0]]
  $region65: #{tpu_custom_call.1} parent=0
    _
  %s7 = ssub.s32 1, %s5
  %s8 = scalar_select 0, %s7, %s5
  $region1: #{tpu_custom_call.1} parent=0
    #allocation2 [shape = 'u8[32768]{0}', space=vmem, size = 0x8000, scoped, tag = 'input window, operand 0']
    #allocation3 [shape = 's32[2]{0}', space=sflag, size = 0x8, scoped, tag = 'scoped memory for tpu_custom_call.1']
    #allocation4 [shape = 's32[2]{0}', space=sflag, size = 0x8, scoped, tag = 'scoped memory for tpu_custom_call.1']
    #allocation5 [shape = 'u8[32768]{0}', space=vmem, size = 0x8000, scoped, tag = 'input window, operand 1']
    #allocation6 [shape = 's32[2]{0}', space=sflag, size = 0x8, scoped, tag = 'scoped memory for tpu_custom_call.1']
    #allocation7 [shape = 'u8[65536]{0}', space=vmem, size = 0x10000, scoped, tag = 'input window, operand 2']
    #allocation8 [shape = 'u8[8192]{0}', space=vmem, size = 0x2000, scoped, tag = 'input window, operand 3, single buffered']
    #allocation9 [shape = 's32[1]{0}', space=sflag, size = 0x4, scoped, tag = 'scoped memory for tpu_custom_call.1']
    #allocation10 [shape = 'u8[65536]{0}', space=vmem, size = 0x10000, scoped, tag = 'output window, operand 0']
    %9 = vsyncpa [#allocation3], 0
    %s10 = scalar_lea.sflag [#allocation3], 1
    %11 = vsyncpa %s10, 0
    %12 = vsyncpa [#allocation6], 0
    %s13 = scalar_lea.sflag [#allocation6], 1
    %14 = vsyncpa %s13, 0
    %15 = vsyncpa [#allocation9], 0
    %16 = vsyncpa [#allocation4], 0
    %s17 = scalar_lea.sflag [#allocation4], 1
    %18 = vsyncpa %s17, 0
    loop: start=0, step=1, limit=4
    $region2: #{tpu_custom_call.1} parent=1 // loop_pre_header
      _
    $region3: #{tpu_custom_call.1} parent=1 // loop_header
      %s20 = sphi 0, %s24
      %p21 = scmp.ge.s32.totalorder %s20, 4
      %s27 = sphi 0, %s39
      %s28 = sphi 0, %s35
      %s29 = sphi 0, %s27
      %s30 = sphi 0, %s28
      %s31 = sphi 0, %s29
      %s32 = sphi 0, %s30
      %s44 = sphi 0, %s46
      %s47 = sphi 0, %s44
      %s48 = sphi 0, %s47
      %s64 = sphi 0, %s48
      %s70 = sphi 0, %s72
      %s73 = sphi 0, %s70
      %s74 = sphi 0, %s73
      %s90 = sphi 0, %s74
      %s98 = sphi 0, %s100
      %s101 = sphi 0, %s98
      %s102 = sphi 0, %s101
      %s118 = sphi 0, %s102
      %s122 = sphi 0, %s122
      %s124 = sphi 0, %s122
      %s125 = sphi 0, %s124
      %s139 = sphi 0, %s125
      %s147 = sphi 0, %s149
      %s150 = sphi 0, %s147
      %s151 = sphi 0, %s150
      %s167 = sphi 0, %s151
    $region4: #{tpu_custom_call.1} parent=1 // loop_header_branch
      %23 = sbr.rel (%p21) target = $region8
    $region5: #{tpu_custom_call.1} parent=1 // loop_body
      %s25 = ssub.s32 %s20, 1
      %s26 = ssub.s32 %s20, 2
      %s33 = sadd.s32 1, %s28
      %p34 = scmp.ge.s32.totalorder %s33, 1
      %s35 = scalar_select %p34, 0, %s33
      %s36 = sadd.s32 1, %s27
      %s37 = scalar_select %p34, %s36, %s27
      %p38 = scmp.ge.s32.totalorder %s37, 2
      %s39 = scalar_select %p38, 0, %s37
      %s40 = ssub.s32 %s27, %s39
      %s41 = ssub.s32 %s28, %s35
      %s42 = sor.u32 %s40, %s41
      %p43 = scmp.eq.s32.totalorder %s42, 0
      %s45 = sadd.s32 %s44, 1
      %s46 = scalar_select %p43, %s44, %s45
      %p49 = pneg %p43
      %p50 = scmp.eq.s32.totalorder %s20, 1
      %p51 = por %p49, %p50
      %p52 = scmp.ne.s32.totalorder %s44, %s47
      %p53 = scmp.eq.s32.totalorder %s20, 0
      %p54 = por %p52, %p53
      %p55 = scmp.ne.s32.totalorder %s44, %s47
      %p56 = scmp.eq.s32.totalorder %s25, 1
      %p57 = por %p55, %p56
      %p58 = scmp.ne.s32.totalorder %s47, %s48
      %p59 = scmp.eq.s32.totalorder %s25, 0
      %p60 = por %p58, %p59
      %p61 = scmp.ne.s32.totalorder %s47, %s48
      %p62 = scmp.eq.s32.totalorder %s26, 1
      %p63 = por %p61, %p62
      %p65 = scmp.ne.s32.totalorder %s48, %s64
      %p66 = scmp.eq.s32.totalorder %s26, 0
      %p67 = por %p65, %p66
      %s68 = ssub.s32 %s27, %s39
      %p69 = scmp.eq.s32.totalorder %s68, 0
      %s71 = sadd.s32 %s70, 1
      %s72 = scalar_select %p69, %s70, %s71
      %p75 = pneg %p69
      %p76 = scmp.eq.s32.totalorder %s20, 1
      %p77 = por %p75, %p76
      %p78 = scmp.ne.s32.totalorder %s70, %s73
      %p79 = scmp.eq.s32.totalorder %s20, 0
      %p80 = por %p78, %p79
      %p81 = scmp.ne.s32.totalorder %s70, %s73
      %p82 = scmp.eq.s32.totalorder %s25, 1
      %p83 = por %p81, %p82
      %p84 = scmp.ne.s32.totalorder %s73, %s74
      %p85 = scmp.eq.s32.totalorder %s25, 0
      %p86 = por %p84, %p85
      %p87 = scmp.ne.s32.totalorder %s73, %s74
      %p88 = scmp.eq.s32.totalorder %s26, 1
      %p89 = por %p87, %p88
      %p91 = scmp.ne.s32.totalorder %s74, %s90
      %p92 = scmp.eq.s32.totalorder %s26, 0
      %p93 = por %p91, %p92
      %s94 = ssub.s32 %s27, %s39
      %s95 = ssub.s32 %s28, %s35
      %s96 = sor.u32 %s94, %s95
      %p97 = scmp.eq.s32.totalorder %s96, 0
      %s99 = sadd.s32 %s98, 1
      %s100 = scalar_select %p97, %s98, %s99
      %p103 = pneg %p97
      %p104 = scmp.eq.s32.totalorder %s20, 1
      %p105 = por %p103, %p104
      %p106 = scmp.ne.s32.totalorder %s98, %s101
      %p107 = scmp.eq.s32.totalorder %s20, 0
      %p108 = por %p106, %p107
      %p109 = scmp.ne.s32.totalorder %s98, %s101
      %p110 = scmp.eq.s32.totalorder %s25, 1
      %p111 = por %p109, %p110
      %p112 = scmp.ne.s32.totalorder %s101, %s102
      %p113 = scmp.eq.s32.totalorder %s25, 0
      %p114 = por %p112, %p113
      %p115 = scmp.ne.s32.totalorder %s101, %s102
      %p116 = scmp.eq.s32.totalorder %s26, 1
      %p117 = por %p115, %p116
      %p119 = scmp.ne.s32.totalorder %s102, %s118
      %p120 = scmp.eq.s32.totalorder %s26, 0
      %p121 = por %p119, %p120
      %s123 = sadd.s32 %s122, 1
      %p126 = scmp.eq.s32.totalorder %s20, 1
      %p127 = scmp.ne.s32.totalorder %s122, %s124
      %p128 = scmp.eq.s32.totalorder %s20, 0
      %p129 = por %p127, %p128
      %p130 = scmp.ne.s32.totalorder %s122, %s124
      %p131 = scmp.eq.s32.totalorder %s25, 1
      %p132 = por %p130, %p131
      %p133 = scmp.ne.s32.totalorder %s124, %s125
      %p134 = scmp.eq.s32.totalorder %s25, 0
      %p135 = por %p133, %p134
      %p136 = scmp.ne.s32.totalorder %s124, %s125
      %p137 = scmp.eq.s32.totalorder %s26, 1
      %p138 = por %p136, %p137
      %p140 = scmp.ne.s32.totalorder %s125, %s139
      %p141 = scmp.eq.s32.totalorder %s26, 0
      %p142 = por %p140, %p141
      %s143 = ssub.s32 %s27, %s39
      %s144 = ssub.s32 %s28, %s35
      %s145 = sor.u32 %s143, %s144
      %p146 = scmp.eq.s32.totalorder %s145, 0
      %s148 = sadd.s32 %s147, 1
      %s149 = scalar_select %p146, %s147, %s148
      %p152 = pneg %p146
      %p153 = scmp.eq.s32.totalorder %s20, 1
      %p154 = por %p152, %p153
      %p155 = scmp.ne.s32.totalorder %s147, %s150
      %p156 = scmp.eq.s32.totalorder %s20, 0
      %p157 = por %p155, %p156
      %p158 = scmp.ne.s32.totalorder %s147, %s150
      %p159 = scmp.eq.s32.totalorder %s25, 1
      %p160 = por %p158, %p159
      %p161 = scmp.ne.s32.totalorder %s150, %s151
      %p162 = scmp.eq.s32.totalorder %s25, 0
      %p163 = por %p161, %p162
      %p164 = scmp.ne.s32.totalorder %s150, %s151
      %p165 = scmp.eq.s32.totalorder %s26, 1
      %p166 = por %p164, %p165
      %p168 = scmp.ne.s32.totalorder %s151, %s167
      %p169 = scmp.eq.s32.totalorder %s26, 0
      %p170 = por %p168, %p169
      %p171 = scmp.le.s32.totalorder 1, %s20
      %p172 = scmp.lt.s32.totalorder %s20, 3
      %p173 = pnand %p171, %p172
      %p174 = pneg %p173
      // Predicated region
      $region9: #{tpu_custom_call.1} parent=5 // pred_check
        _
      $region10: #{tpu_custom_call.1} parent=5 // pred_check_branch
        %176 = sbr.rel (%p173) target = $region12
      $region11: #{tpu_custom_call.1} parent=5 // pred_region
        %s177 = ssub.s32 %s20, 1
        // Predicated region
        $region13: #{tpu_custom_call.1} parent=11 // pred_check
          %p178 = pneg %p135
        $region14: #{tpu_custom_call.1} parent=11 // pred_check_branch
          %180 = sbr.rel (%p178) target = $region16
        $region15: #{tpu_custom_call.1} parent=11 // pred_region
          %s182 = ssub.s32 256, 256
          %183 = vsyncadd [#allocation9], %s182
          %s184 = sshll.u32 [#allocation8], 4
          %s185 = int_to_ptr.vmem [resolvable:$true] %s184
          %190 = dma.hbm_to_vmem [thread:$0]  %s3, 256, %s185, [#allocation9], 64, 64, 4
        $region16: #{tpu_custom_call.1} parent=11 // pred_fallthru
          _
      $region12: #{tpu_custom_call.1} parent=5 // pred_fallthru
        _
      %p191 = scmp.lt.s32.totalorder %s20, 2
      // Predicated region
      $region17: #{tpu_custom_call.1} parent=5 // pred_check
        %p192 = pneg %p191
      $region18: #{tpu_custom_call.1} parent=5 // pred_check_branch
        %194 = sbr.rel (%p192) target = $region20
      $region19: #{tpu_custom_call.1} parent=5 // pred_region
        // Predicated region
        $region21: #{tpu_custom_call.1} parent=19 // pred_check
          %p195 = pneg %p54
        $region22: #{tpu_custom_call.1} parent=19 // pred_check_branch
          %197 = sbr.rel (%p195) target = $region24
        $region23: #{tpu_custom_call.1} parent=19 // pred_region
          %s198 = sand.u32 %s44, 1
          %s199 = scalar_lea.sflag [#allocation3], %s198
          %s200 = sand.u32 %s44, 1
          %s201 = smul.addr %s200, 32
          %s202 = scalar_lea.vmem [#allocation2], %s201
          %s203 = smul.u32 2, %s28
          %s205 = ssub.s32 512, 512
          %206 = vsyncadd %s199, %s205
          %s207 = smul.addr %s27, 8
          %s208 = sadd.s32 %s203, %s207
          %s209 = smul.addr %s208, 64
          %s210 = scalar_lea.hbm %s0, %s209
          %s211 = sshll.u32 %s202, 4
          %s212 = int_to_ptr.vmem [resolvable:$true] %s211
          %217 = dma.hbm_to_vmem [thread:$0]  %s210, 512, %s212, %s199, 128, 128, 8
        $region24: #{tpu_custom_call.1} parent=19 // pred_fallthru
          _
        // Predicated region
        $region25: #{tpu_custom_call.1} parent=19 // pred_check
          %p218 = pneg %p80
        $region26: #{tpu_custom_call.1} parent=19 // pred_check_branch
          %220 = sbr.rel (%p218) target = $region28
        $region27: #{tpu_custom_call.1} parent=19 // pred_region
          %s221 = sand.u32 %s20, 1
          %s222 = scalar_lea.sflag [#allocation6], %s221
          %s223 = sand.u32 %s70, 1
          %s224 = smul.addr %s223, 32
          %s225 = scalar_lea.vmem [#allocation5], %s224
          %s227 = ssub.s32 512, 512
          %228 = vsyncadd %s222, %s227
          %s229 = smul.addr %s27, 8
          %s230 = smul.addr %s229, 64
          %s231 = scalar_lea.hbm %s1, %s230
          %s232 = sshll.u32 %s225, 4
          %s233 = int_to_ptr.vmem [resolvable:$true] %s232
          %238 = dma.hbm_to_vmem [thread:$0]  %s231, 512, %s233, %s222, 128, 128, 8
        $region28: #{tpu_custom_call.1} parent=19 // pred_fallthru
          _
        // Predicated region
        $region29: #{tpu_custom_call.1} parent=19 // pred_check
          %p239 = pneg %p108
        $region30: #{tpu_custom_call.1} parent=19 // pred_check_branch
          %241 = sbr.rel (%p239) target = $region32
        $region31: #{tpu_custom_call.1} parent=19 // pred_region
          %s242 = sand.u32 %s20, 1
          %s243 = scalar_lea.sflag [#allocation6], %s242
          %s244 = sand.u32 %s98, 1
          %s245 = smul.addr %s244, 64
          %s246 = scalar_lea.vmem [#allocation7], %s245
          %s247 = smul.u32 2, %s28
          %s249 = ssub.s32 1024, 1024
          %250 = vsyncadd %s243, %s249
          %s251 = smul.addr %s27, 8
          %s252 = sadd.s32 %s247, %s251
          %s253 = smul.addr %s252, 128
          %s254 = scalar_lea.hbm %s2, %s253
          %s255 = sshll.u32 %s246, 4
          %s256 = int_to_ptr.vmem [resolvable:$true] %s255
          %261 = dma.hbm_to_vmem [thread:$0]  %s254, 1024, %s256, %s243, 256, 256, 16
        $region32: #{tpu_custom_call.1} parent=19 // pred_fallthru
          _
      $region20: #{tpu_custom_call.1} parent=5 // pred_fallthru
        _
      %p262 = scmp.le.s32.totalorder 1, %s20
      %p263 = scmp.lt.s32.totalorder %s20, 3
      %p264 = pnand %p262, %p263
      %p265 = pneg %p264
      // Predicated region
      $region33: #{tpu_custom_call.1} parent=5 // pred_check
        _
      $region34: #{tpu_custom_call.1} parent=5 // pred_check_branch
        %267 = sbr.rel (%p264) target = $region36
      $region35: #{tpu_custom_call.1} parent=5 // pred_region
        %s268 = ssub.s32 %s20, 1
        %s269 = sand.u32 %s47, 1
        %s270 = scalar_lea.sflag [#allocation3], %s269
        %s271 = sand.u32 %s47, 1
        %s272 = smul.addr %s271, 32
        %s273 = scalar_lea.vmem [#allocation2], %s272
        // Predicated region
        $region37: #{tpu_custom_call.1} parent=35 // pred_check
          %p274 = pneg %p60
        $region38: #{tpu_custom_call.1} parent=35 // pred_check_branch
          %276 = sbr.rel (%p274) target = $region40
        $region39: #{tpu_custom_call.1} parent=35 // pred_region
          %277 = dma.done %s270, 512
        $region40: #{tpu_custom_call.1} parent=35 // pred_fallthru
          _
        %s278 = sand.u32 %s25, 1
        %s279 = scalar_lea.sflag [#allocation6], %s278
        %s280 = sand.u32 %s73, 1
        %s281 = smul.addr %s280, 32
        %s282 = scalar_lea.vmem [#allocation5], %s281
        // Predicated region
        $region41: #{tpu_custom_call.1} parent=35 // pred_check
          %p283 = pneg %p86
        $region42: #{tpu_custom_call.1} parent=35 // pred_check_branch
          %285 = sbr.rel (%p283) target = $region44
        $region43: #{tpu_custom_call.1} parent=35 // pred_region
          %286 = dma.done %s279, 512
        $region44: #{tpu_custom_call.1} parent=35 // pred_fallthru
          _
        %s287 = sand.u32 %s25, 1
        %s288 = scalar_lea.sflag [#allocation6], %s287
        %s289 = sand.u32 %s101, 1
        %s290 = smul.addr %s289, 64
        %s291 = scalar_lea.vmem [#allocation7], %s290
        // Predicated region
        $region45: #{tpu_custom_call.1} parent=35 // pred_check
          %p292 = pneg %p114
        $region46: #{tpu_custom_call.1} parent=35 // pred_check_branch
          %294 = sbr.rel (%p292) target = $region48
        $region47: #{tpu_custom_call.1} parent=35 // pred_region
          %295 = dma.done %s288, 1024
        $region48: #{tpu_custom_call.1} parent=35 // pred_fallthru
          _
        // Predicated region
        $region49: #{tpu_custom_call.1} parent=35 // pred_check
          %p296 = pneg %p135
        $region50: #{tpu_custom_call.1} parent=35 // pred_check_branch
          %298 = sbr.rel (%p296) target = $region52
        $region51: #{tpu_custom_call.1} parent=35 // pred_region
          %299 = dma.done [#allocation9], 256
        $region52: #{tpu_custom_call.1} parent=35 // pred_fallthru
          _
        %s300 = sand.u32 %s47, 1
        %s301 = scalar_lea.sflag [#allocation3], %s300
        %s302 = sand.u32 %s47, 1
        %s303 = smul.addr %s302, 32
        %s304 = scalar_lea.vmem [#allocation2], %s303
        %p305 = pneg %p60
        %p306 = pneg %p57
        %s307 = sand.u32 %s25, 1
        %s308 = scalar_lea.sflag [#allocation6], %s307
        %s309 = sand.u32 %s73, 1
        %s310 = smul.addr %s309, 32
        %s311 = scalar_lea.vmem [#allocation5], %s310
        %p312 = pneg %p86
        %p313 = pneg %p83
        %s314 = sand.u32 %s25, 1
        %s315 = scalar_lea.sflag [#allocation6], %s314
        %s316 = sand.u32 %s101, 1
        %s317 = smul.addr %s316, 64
        %s318 = scalar_lea.vmem [#allocation7], %s317
        %p319 = pneg %p114
        %p320 = pneg %p111
        %p321 = pneg %p135
        %p322 = pneg %p132
        %p323 = pneg %p163
        %p324 = pneg %p160
        %s325 = sand.u32 %s150, 1
        %s326 = scalar_lea.sflag [#allocation4], %s325
        %s327 = sand.u32 %s150, 1
        %s328 = smul.addr %s327, 64
        %s329 = scalar_lea.vmem [#allocation10], %s328
        %s330 = smul.u32 2, %s30
        %s331 = smul.u32 2, %s30
        %s332 = smul.u32 2, %s30
        %v334 = vld [vmem:[%s282] sm:$0xff]
        %v335 = vld [vmem:[%s282 + $0x8] sm:$0xff]
        %v336 = vld [vmem:[%s282 + $0x10] sm:$0xff]
        %v337 = vld [vmem:[%s282 + $0x18] sm:$0xff]
        %v338 = vld [vmem:[%s273] sm:$0xff]
        %v339 = vld [vmem:[%s273 + $0x8] sm:$0xff]
        %v340 = vld [vmem:[%s273 + $0x10] sm:$0xff]
        %v341 = vld [vmem:[%s273 + $0x18] sm:$0xff]
        %v346 = vunpack.c.l.b16 %v334
        %v347 = vunpack.c.h.b16 %v334
        %v348 = vunpack.c.l.b16 %v335
        %v349 = vunpack.c.h.b16 %v335
        %v350 = vunpack.c.l.b16 %v336
        %v351 = vunpack.c.h.b16 %v336
        %v352 = vunpack.c.l.b16 %v337
        %v353 = vunpack.c.h.b16 %v337
        %v354 = vpack.c.b16 %v348, %v346
        %v355 = vpack.c.b16 %v349, %v347
        %v356 = vpack.c.b16 %v352, %v350
        %v357 = vpack.c.b16 %v353, %v351
        %362 = vxpose.xlu0.c.b16.start [1/8] %v354, 128
        %363 = vxpose.xlu0.c.b16.cont [2/8] %v356, 128
        %364 = vxpose.xlu0.c.b16.cont [3/8] 0, 128
        %365 = vxpose.xlu0.c.b16.cont [4/8] 0, 128
        %366 = vxpose.xlu0.c.b16.cont [5/8] 0, 128
        %367 = vxpose.xlu0.c.b16.cont [6/8] 0, 128
        %368 = vxpose.xlu0.c.b16.cont [7/8] 0, 128
        %369 = vxpose.xlu0.c.b16.end [8/8] 0, 128
        %v370 = vpop.trf.xlu0
        %v371 = vpop.trf.xlu0
        %v372 = vpop.trf.xlu0
        %v373 = vpop.trf.xlu0
        %v374 = vpop.trf.xlu0
        %v375 = vpop.trf.xlu0
        %v376 = vpop.trf.xlu0
        %v377 = vpop.trf.xlu0
        %378 = vxpose.xlu0.c.b16.start [1/8] %v355, 128
        %379 = vxpose.xlu0.c.b16.cont [2/8] %v357, 128
        %380 = vxpose.xlu0.c.b16.cont [3/8] 0, 128
        %381 = vxpose.xlu0.c.b16.cont [4/8] 0, 128
        %382 = vxpose.xlu0.c.b16.cont [5/8] 0, 128
        %383 = vxpose.xlu0.c.b16.cont [6/8] 0, 128
        %384 = vxpose.xlu0.c.b16.cont [7/8] 0, 128
        %385 = vxpose.xlu0.c.b16.end [8/8] 0, 128
        %v386 = vpop.trf.xlu0
        %v387 = vpop.trf.xlu0
        %v388 = vpop.trf.xlu0
        %v389 = vpop.trf.xlu0
        %v390 = vpop.trf.xlu0
        %v391 = vpop.trf.xlu0
        %v392 = vpop.trf.xlu0
        %v393 = vpop.trf.xlu0
        %v398 = vunpack.c.l.b16 %v338
        %v399 = vunpack.c.h.b16 %v338
        %v400 = vunpack.c.l.b16 %v339
        %v401 = vunpack.c.h.b16 %v339
        %v402 = vunpack.c.l.b16 %v340
        %v403 = vunpack.c.h.b16 %v340
        %v404 = vunpack.c.l.b16 %v341
        %v405 = vunpack.c.h.b16 %v341
        %v406 = vpack.c.b16 %v400, %v398
        %v407 = vpack.c.b16 %v401, %v399
        %v408 = vpack.c.b16 %v404, %v402
        %v409 = vpack.c.b16 %v405, %v403
        %vm414 = vcmask 261120
        %v416 = vsel %vm414, %v370, 0
        %v419 = vsel %vm414, %v371, 0
        %v422 = vsel %vm414, %v372, 0
        %v425 = vsel %vm414, %v373, 0
        %v428 = vsel %vm414, %v374, 0
        %v431 = vsel %vm414, %v375, 0
        %v434 = vsel %vm414, %v376, 0
        %v437 = vsel %vm414, %v377, 0
        %v440 = vsel %vm414, %v386, 0
        %v443 = vsel %vm414, %v387, 0
        %v446 = vsel %vm414, %v388, 0
        %v449 = vsel %vm414, %v389, 0
        %v452 = vsel %vm414, %v390, 0
        %v455 = vsel %vm414, %v391, 0
        %v458 = vsel %vm414, %v392, 0
        %v461 = vsel %vm414, %v393, 0
        %463 = vmatprep.subr.bf16.mxu0 %v407
        %464 = vmatpush1.bf16.msra.mxu0 %v406
        %465 = vmatprep.subr.bf16.mxu0 %v409
        %466 = vmatpush1.bf16.msra.mxu0 %v408
        %467 = vmatprep.subr.bf16.mxu0 0
        %468 = vmatpush1.bf16.msra.mxu0 0
        %469 = vmatprep.subr.bf16.mxu0 0
        %470 = vmatpush1.bf16.msra.mxu0 0
        %471 = vmatprep.subr.bf16.mxu0 0
        %472 = vmatpush1.bf16.msra.mxu0 0
        %473 = vmatprep.subr.bf16.mxu0 0
        %474 = vmatpush1.bf16.msra.mxu0 0
        %475 = vmatprep.subr.bf16.mxu0 0
        %476 = vmatpush1.bf16.msra.mxu0 0
        %477 = vmatprep.subr.bf16.mxu0 0
        %478 = vmatpush1.bf16.msra.mxu0 0
        %479 = vmatprep.subr.bf16.mxu0 0
        %480 = vmatpush1.bf16.msra.mxu0 0
        %481 = vmatprep.subr.bf16.mxu0 0
        %482 = vmatpush1.bf16.msra.mxu0 0
        %483 = vmatprep.subr.bf16.mxu0 0
        %484 = vmatpush1.bf16.msra.mxu0 0
        %485 = vmatprep.subr.bf16.mxu0 0
        %486 = vmatpush1.bf16.msra.mxu0 0
        %487 = vmatprep.subr.bf16.mxu0 0
        %488 = vmatpush1.bf16.msra.mxu0 0
        %489 = vmatprep.subr.bf16.mxu0 0
        %490 = vmatpush1.bf16.msra.mxu0 0
        %491 = vmatprep.subr.bf16.mxu0 0
        %492 = vmatpush1.bf16.msra.mxu0 0
        %493 = vmatprep.subr.bf16.mxu0 0
        %494 = vmatpush1.bf16.msra.mxu0 0
        %495 = vmatprep.mubr.bf16.mxu0 0
        %496 = vmatmul.mubr.bf16.gmra.mrb[0].mxu0 %v416
        %v497 = vpop.f32.mrb[0].mxu0
        %v498 = vadd.f32 0.0, %v497
        %v499 = vpop.f32.mrb[0].mxu0
        %v500 = vadd.f32 0.0, %v499
        %v501 = vpop.f32.mrb[0].mxu0
        %v502 = vadd.f32 0.0, %v501
        %v503 = vpop.f32.mrb[0].mxu0
        %v504 = vadd.f32 0.0, %v503
        %505 = vmatprep.mubr.bf16.mxu0 0
        %506 = vmatmul.mubr.bf16.gmra.mrb[0].mxu0 %v419
        %v507 = vpop.f32.mrb[0].mxu0
        %v508 = vadd.f32 0.0, %v507
        %v509 = vpop.f32.mrb[0].mxu0
        %v510 = vadd.f32 0.0, %v509
        %v511 = vpop.f32.mrb[0].mxu0
        %v512 = vadd.f32 0.0, %v511
        %v513 = vpop.f32.mrb[0].mxu0
        %v514 = vadd.f32 0.0, %v513
        %515 = vmatprep.mubr.bf16.mxu0 0
        %516 = vmatmul.mubr.bf16.gmra.mrb[0].mxu0 %v422
        %v517 = vpop.f32.mrb[0].mxu0
        %v518 = vadd.f32 0.0, %v517
        %v519 = vpop.f32.mrb[0].mxu0
        %v520 = vadd.f32 0.0, %v519
        %v521 = vpop.f32.mrb[0].mxu0
        %v522 = vadd.f32 0.0, %v521
        %v523 = vpop.f32.mrb[0].mxu0
        %v524 = vadd.f32 0.0, %v523
        %525 = vmatprep.mubr.bf16.mxu0 0
        %526 = vmatmul.mubr.bf16.gmra.mrb[0].mxu0 %v425
        %v527 = vpop.f32.mrb[0].mxu0
        %v528 = vadd.f32 0.0, %v527
        %v529 = vpop.f32.mrb[0].mxu0
        %v530 = vadd.f32 0.0, %v529
        %v531 = vpop.f32.mrb[0].mxu0
        %v532 = vadd.f32 0.0, %v531
        %v533 = vpop.f32.mrb[0].mxu0
        %v534 = vadd.f32 0.0, %v533
        %535 = vmatprep.mubr.bf16.mxu0 0
        %536 = vmatmul.mubr.bf16.gmra.mrb[0].mxu0 %v428
        %v537 = vpop.f32.mrb[0].mxu0
        %v538 = vadd.f32 0.0, %v537
        %v539 = vpop.f32.mrb[0].mxu0
        %v540 = vadd.f32 0.0, %v539
        %v541 = vpop.f32.mrb[0].mxu0
        %v542 = vadd.f32 0.0, %v541
        %v543 = vpop.f32.mrb[0].mxu0
        %v544 = vadd.f32 0.0, %v543
        %545 = vmatprep.mubr.bf16.mxu0 0
        %546 = vmatmul.mubr.bf16.gmra.mrb[0].mxu0 %v431
        %v547 = vpop.f32.mrb[0].mxu0
        %v548 = vadd.f32 0.0, %v547
        %v549 = vpop.f32.mrb[0].mxu0
        %v550 = vadd.f32 0.0, %v549
        %v551 = vpop.f32.mrb[0].mxu0
        %v552 = vadd.f32 0.0, %v551
        %v553 = vpop.f32.mrb[0].mxu0
        %v554 = vadd.f32 0.0, %v553
        %555 = vmatprep.mubr.bf16.mxu0 0
        %556 = vmatmul.mubr.bf16.gmra.mrb[0].mxu0 %v434
        %v557 = vpop.f32.mrb[0].mxu0
        %v558 = vadd.f32 0.0, %v557
        %v559 = vpop.f32.mrb[0].mxu0
        %v560 = vadd.f32 0.0, %v559
        %v561 = vpop.f32.mrb[0].mxu0
        %v562 = vadd.f32 0.0, %v561
        %v563 = vpop.f32.mrb[0].mxu0
        %v564 = vadd.f32 0.0, %v563
        %565 = vmatprep.mubr.bf16.mxu0 0
        %566 = vmatmul.mubr.bf16.gmra.mrb[0].mxu0 %v437
        %v567 = vpop.f32.mrb[0].mxu0
        %v568 = vadd.f32 0.0, %v567
        %v569 = vpop.f32.mrb[0].mxu0
        %v570 = vadd.f32 0.0, %v569
        %v571 = vpop.f32.mrb[0].mxu0
        %v572 = vadd.f32 0.0, %v571
        %v573 = vpop.f32.mrb[0].mxu0
        %v574 = vadd.f32 0.0, %v573
        %575 = vmatprep.mubr.bf16.mxu0 0
        %576 = vmatmul.mubr.bf16.gmra.mrb[0].mxu0 %v440
        %v577 = vpop.f32.mrb[0].mxu0
        %v578 = vadd.f32 0.0, %v577
        %v579 = vpop.f32.mrb[0].mxu0
        %v580 = vadd.f32 0.0, %v579
        %v581 = vpop.f32.mrb[0].mxu0
        %v582 = vadd.f32 0.0, %v581
        %v583 = vpop.f32.mrb[0].mxu0
        %v584 = vadd.f32 0.0, %v583
        %585 = vmatprep.mubr.bf16.mxu0 0
        %586 = vmatmul.mubr.bf16.gmra.mrb[0].mxu0 %v443
        %v587 = vpop.f32.mrb[0].mxu0
        %v588 = vadd.f32 0.0, %v587
        %v589 = vpop.f32.mrb[0].mxu0
        %v590 = vadd.f32 0.0, %v589
        %v591 = vpop.f32.mrb[0].mxu0
        %v592 = vadd.f32 0.0, %v591
        %v593 = vpop.f32.mrb[0].mxu0
        %v594 = vadd.f32 0.0, %v593
        %595 = vmatprep.mubr.bf16.mxu0 0
        %596 = vmatmul.mubr.bf16.gmra.mrb[0].mxu0 %v446
        %v597 = vpop.f32.mrb[0].mxu0
        %v598 = vadd.f32 0.0, %v597
        %v599 = vpop.f32.mrb[0].mxu0
        %v600 = vadd.f32 0.0, %v599
        %v601 = vpop.f32.mrb[0].mxu0
        %v602 = vadd.f32 0.0, %v601
        %v603 = vpop.f32.mrb[0].mxu0
        %v604 = vadd.f32 0.0, %v603
        %605 = vmatprep.mubr.bf16.mxu0 0
        %606 = vmatmul.mubr.bf16.gmra.mrb[0].mxu0 %v449
        %v607 = vpop.f32.mrb[0].mxu0
        %v608 = vadd.f32 0.0, %v607
        %v609 = vpop.f32.mrb[0].mxu0
        %v610 = vadd.f32 0.0, %v609
        %v611 = vpop.f32.mrb[0].mxu0
        %v612 = vadd.f32 0.0, %v611
        %v613 = vpop.f32.mrb[0].mxu0
        %v614 = vadd.f32 0.0, %v613
        %615 = vmatprep.mubr.bf16.mxu0 0
        %616 = vmatmul.mubr.bf16.gmra.mrb[0].mxu0 %v452
        %v617 = vpop.f32.mrb[0].mxu0
        %v618 = vadd.f32 0.0, %v617
        %v619 = vpop.f32.mrb[0].mxu0
        %v620 = vadd.f32 0.0, %v619
        %v621 = vpop.f32.mrb[0].mxu0
        %v622 = vadd.f32 0.0, %v621
        %v623 = vpop.f32.mrb[0].mxu0
        %v624 = vadd.f32 0.0, %v623
        %625 = vmatprep.mubr.bf16.mxu0 0
        %626 = vmatmul.mubr.bf16.gmra.mrb[0].mxu0 %v455
        %v627 = vpop.f32.mrb[0].mxu0
        %v628 = vadd.f32 0.0, %v627
        %v629 = vpop.f32.mrb[0].mxu0
        %v630 = vadd.f32 0.0, %v629
        %v631 = vpop.f32.mrb[0].mxu0
        %v632 = vadd.f32 0.0, %v631
        %v633 = vpop.f32.mrb[0].mxu0
        %v634 = vadd.f32 0.0, %v633
        %635 = vmatprep.mubr.bf16.mxu0 0
        %636 = vmatmul.mubr.bf16.gmra.mrb[0].mxu0 %v458
        %v637 = vpop.f32.mrb[0].mxu0
        %v638 = vadd.f32 0.0, %v637
        %v639 = vpop.f32.mrb[0].mxu0
        %v640 = vadd.f32 0.0, %v639
        %v641 = vpop.f32.mrb[0].mxu0
        %v642 = vadd.f32 0.0, %v641
        %v643 = vpop.f32.mrb[0].mxu0
        %v644 = vadd.f32 0.0, %v643
        %645 = vmatprep.mubr.bf16.mxu0 0
        %646 = vmatmul.mubr.bf16.gmra.mrb[0].mxu0 %v461
        %v647 = vpop.f32.mrb[0].mxu0
        %v648 = vadd.f32 0.0, %v647
        %v649 = vpop.f32.mrb[0].mxu0
        %v650 = vadd.f32 0.0, %v649
        %v651 = vpop.f32.mrb[0].mxu0
        %v652 = vadd.f32 0.0, %v651
        %v653 = vpop.f32.mrb[0].mxu0
        %v654 = vadd.f32 0.0, %v653
        %655 = vdwg.mxu0
        %v656 = vmax.f32 %v498, %v508
        %v657 = vmax.f32 %v502, %v512
        %v658 = vmax.f32 %v656, %v518
        %v659 = vmax.f32 %v657, %v522
        %v660 = vmax.f32 %v658, %v528
        %v661 = vmax.f32 %v659, %v532
        %v662 = vmax.f32 %v660, %v538
        %v663 = vmax.f32 %v661, %v542
        %v664 = vmax.f32 %v662, %v548
        %v665 = vmax.f32 %v663, %v552
        %v666 = vmax.f32 %v664, %v558
        %v667 = vmax.f32 %v665, %v562
        %v668 = vmax.f32 %v666, %v568
        %v669 = vmax.f32 %v667, %v572
        %v670 = vmax.f32 %v668, %v578
        %v671 = vmax.f32 %v669, %v582
        %v672 = vmax.f32 %v670, %v588
        %v673 = vmax.f32 %v671, %v592
        %v674 = vmax.f32 %v672, %v598
        %v675 = vmax.f32 %v673, %v602
        %v676 = vmax.f32 %v674, %v608
        %v677 = vmax.f32 %v675, %v612
        %v678 = vmax.f32 %v676, %v618
        %v679 = vmax.f32 %v677, %v622
        %v680 = vmax.f32 %v678, %v628
        %v681 = vmax.f32 %v679, %v632
        %v682 = vmax.f32 %v680, %v638
        %v683 = vmax.f32 %v681, %v642
        %v684 = vmax.f32 %v682, %v648
        %v685 = vmax.f32 %v683, %v652
        %v686 = vmax.f32 %v684, %v685
        %v687 = vrot.slane %v686, 4
        %v688 = vmax.f32 %v686, %v687
        %v689 = vrot.slane %v688, 2
        %v690 = vmax.f32 %v688, %v689
        %v691 = vrot.slane %v690, 1
        %v692 = vmax.f32 %v690, %v691
        %v693 = vmax.f32 %v500, %v510
        %v694 = vmax.f32 %v504, %v514
        %v695 = vmax.f32 %v693, %v520
        %v696 = vmax.f32 %v694, %v524
        %v697 = vmax.f32 %v695, %v530
        %v698 = vmax.f32 %v696, %v534
        %v699 = vmax.f32 %v697, %v540
        %v700 = vmax.f32 %v698, %v544
        %v701 = vmax.f32 %v699, %v550
        %v702 = vmax.f32 %v700, %v554
        %v703 = vmax.f32 %v701, %v560
        %v704 = vmax.f32 %v702, %v564
        %v705 = vmax.f32 %v703, %v570
        %v706 = vmax.f32 %v704, %v574
        %v707 = vmax.f32 %v705, %v580
        %v708 = vmax.f32 %v706, %v584
        %v709 = vmax.f32 %v707, %v590
        %v710 = vmax.f32 %v708, %v594
        %v711 = vmax.f32 %v709, %v600
        %v712 = vmax.f32 %v710, %v604
        %v713 = vmax.f32 %v711, %v610
        %v714 = vmax.f32 %v712, %v614
        %v715 = vmax.f32 %v713, %v620
        %v716 = vmax.f32 %v714, %v624
        %v717 = vmax.f32 %v715, %v630
        %v718 = vmax.f32 %v716, %v634
        %v719 = vmax.f32 %v717, %v640
        %v720 = vmax.f32 %v718, %v644
        %v721 = vmax.f32 %v719, %v650
        %v722 = vmax.f32 %v720, %v654
        %v723 = vmax.f32 %v721, %v722
        %v724 = vrot.slane %v723, 4
        %v725 = vmax.f32 %v723, %v724
        %v726 = vrot.slane %v725, 2
        %v727 = vmax.f32 %v725, %v726
        %v728 = vrot.slane %v727, 1
        %v729 = vmax.f32 %v727, %v728
        %v730 = vsub.f32 %v498, %v692
        %v731 = vsub.f32 %v500, %v729
        %v732 = vsub.f32 %v502, %v692
        %v733 = vsub.f32 %v504, %v729
        %v734 = vsub.f32 %v508, %v692
        %v735 = vsub.f32 %v510, %v729
        %v736 = vsub.f32 %v512, %v692
        %v737 = vsub.f32 %v514, %v729
        %v738 = vsub.f32 %v518, %v692
        %v739 = vsub.f32 %v520, %v729
        %v740 = vsub.f32 %v522, %v692
        %v741 = vsub.f32 %v524, %v729
        %v742 = vsub.f32 %v528, %v692
        %v743 = vsub.f32 %v530, %v729
        %v744 = vsub.f32 %v532, %v692
        %v745 = vsub.f32 %v534, %v729
        %v746 = vsub.f32 %v538, %v692
        %v747 = vsub.f32 %v540, %v729
        %v748 = vsub.f32 %v542, %v692
        %v749 = vsub.f32 %v544, %v729
        %v750 = vsub.f32 %v548, %v692
        %v751 = vsub.f32 %v550, %v729
        %v752 = vsub.f32 %v552, %v692
        %v753 = vsub.f32 %v554, %v729
        %v754 = vsub.f32 %v558, %v692
        %v755 = vsub.f32 %v560, %v729
        %v756 = vsub.f32 %v562, %v692
        %v757 = vsub.f32 %v564, %v729
        %v758 = vsub.f32 %v568, %v692
        %v759 = vsub.f32 %v570, %v729
        %v760 = vsub.f32 %v572, %v692
        %v761 = vsub.f32 %v574, %v729
        %v762 = vsub.f32 %v578, %v692
        %v763 = vsub.f32 %v580, %v729
        %v764 = vsub.f32 %v582, %v692
        %v765 = vsub.f32 %v584, %v729
        %v766 = vsub.f32 %v588, %v692
        %v767 = vsub.f32 %v590, %v729
        %v768 = vsub.f32 %v592, %v692
        %v769 = vsub.f32 %v594, %v729
        %v770 = vsub.f32 %v598, %v692
        %v771 = vsub.f32 %v600, %v729
        %v772 = vsub.f32 %v602, %v692
        %v773 = vsub.f32 %v604, %v729
        %v774 = vsub.f32 %v608, %v692
        %v775 = vsub.f32 %v610, %v729
        %v776 = vsub.f32 %v612, %v692
        %v777 = vsub.f32 %v614, %v729
        %v778 = vsub.f32 %v618, %v692
        %v779 = vsub.f32 %v620, %v729
        %v780 = vsub.f32 %v622, %v692
        %v781 = vsub.f32 %v624, %v729
        %v782 = vsub.f32 %v628, %v692
        %v783 = vsub.f32 %v630, %v729
        %v784 = vsub.f32 %v632, %v692
        %v785 = vsub.f32 %v634, %v729
        %v786 = vsub.f32 %v638, %v692
        %v787 = vsub.f32 %v640, %v729
        %v788 = vsub.f32 %v642, %v692
        %v789 = vsub.f32 %v644, %v729
        %v790 = vsub.f32 %v648, %v692
        %v791 = vsub.f32 %v650, %v729
        %v792 = vsub.f32 %v652, %v692
        %v793 = vsub.f32 %v654, %v729
        %v794 = vmul.f32 %v730, 1.442695
        %v795 = vpow.pop %v794
        %v796 = vmul.f32 %v731, 1.442695
        %v797 = vpow.pop %v796
        %v798 = vmul.f32 %v732, 1.442695
        %v799 = vpow.pop %v798
        %v800 = vmul.f32 %v733, 1.442695
        %v801 = vpow.pop %v800
        %v802 = vmul.f32 %v734, 1.442695
        %v803 = vpow.pop %v802
        %v804 = vmul.f32 %v735, 1.442695
        %v805 = vpow.pop %v804
        %v806 = vmul.f32 %v736, 1.442695
        %v807 = vpow.pop %v806
        %v808 = vmul.f32 %v737, 1.442695
        %v809 = vpow.pop %v808
        %v810 = vmul.f32 %v738, 1.442695
        %v811 = vpow.pop %v810
        %v812 = vmul.f32 %v739, 1.442695
        %v813 = vpow.pop %v812
        %v814 = vmul.f32 %v740, 1.442695
        %v815 = vpow.pop %v814
        %v816 = vmul.f32 %v741, 1.442695
        %v817 = vpow.pop %v816
        %v818 = vmul.f32 %v742, 1.442695
        %v819 = vpow.pop %v818
        %v820 = vmul.f32 %v743, 1.442695
        %v821 = vpow.pop %v820
        %v822 = vmul.f32 %v744, 1.442695
        %v823 = vpow.pop %v822
        %v824 = vmul.f32 %v745, 1.442695
        %v825 = vpow.pop %v824
        %v826 = vmul.f32 %v746, 1.442695
        %v827 = vpow.pop %v826
        %v828 = vmul.f32 %v747, 1.442695
        %v829 = vpow.pop %v828
        %v830 = vmul.f32 %v748, 1.442695
        %v831 = vpow.pop %v830
        %v832 = vmul.f32 %v749, 1.442695
        %v833 = vpow.pop %v832
        %v834 = vmul.f32 %v750, 1.442695
        %v835 = vpow.pop %v834
        %v836 = vmul.f32 %v751, 1.442695
        %v837 = vpow.pop %v836
        %v838 = vmul.f32 %v752, 1.442695
        %v839 = vpow.pop %v838
        %v840 = vmul.f32 %v753, 1.442695
        %v841 = vpow.pop %v840
        %v842 = vmul.f32 %v754, 1.442695
        %v843 = vpow.pop %v842
        %v844 = vmul.f32 %v755, 1.442695
        %v845 = vpow.pop %v844
        %v846 = vmul.f32 %v756, 1.442695
        %v847 = vpow.pop %v846
        %v848 = vmul.f32 %v757, 1.442695
        %v849 = vpow.pop %v848
        %v850 = vmul.f32 %v758, 1.442695
        %v851 = vpow.pop %v850
        %v852 = vmul.f32 %v759, 1.442695
        %v853 = vpow.pop %v852
        %v854 = vmul.f32 %v760, 1.442695
        %v855 = vpow.pop %v854
        %v856 = vmul.f32 %v761, 1.442695
        %v857 = vpow.pop %v856
        %v858 = vmul.f32 %v762, 1.442695
        %v859 = vpow.pop %v858
        %v860 = vmul.f32 %v763, 1.442695
        %v861 = vpow.pop %v860
        %v862 = vmul.f32 %v764, 1.442695
        %v863 = vpow.pop %v862
        %v864 = vmul.f32 %v765, 1.442695
        %v865 = vpow.pop %v864
        %v866 = vmul.f32 %v766, 1.442695
        %v867 = vpow.pop %v866
        %v868 = vmul.f32 %v767, 1.442695
        %v869 = vpow.pop %v868
        %v870 = vmul.f32 %v768, 1.442695
        %v871 = vpow.pop %v870
        %v872 = vmul.f32 %v769, 1.442695
        %v873 = vpow.pop %v872
        %v874 = vmul.f32 %v770, 1.442695
        %v875 = vpow.pop %v874
        %v876 = vmul.f32 %v771, 1.442695
        %v877 = vpow.pop %v876
        %v878 = vmul.f32 %v772, 1.442695
        %v879 = vpow.pop %v878
        %v880 = vmul.f32 %v773, 1.442695
        %v881 = vpow.pop %v880
        %v882 = vmul.f32 %v774, 1.442695
        %v883 = vpow.pop %v882
        %v884 = vmul.f32 %v775, 1.442695
        %v885 = vpow.pop %v884
        %v886 = vmul.f32 %v776, 1.442695
        %v887 = vpow.pop %v886
        %v888 = vmul.f32 %v777, 1.442695
        %v889 = vpow.pop %v888
        %v890 = vmul.f32 %v778, 1.442695
        %v891 = vpow.pop %v890
        %v892 = vmul.f32 %v779, 1.442695
        %v893 = vpow.pop %v892
        %v894 = vmul.f32 %v780, 1.442695
        %v895 = vpow.pop %v894
        %v896 = vmul.f32 %v781, 1.442695
        %v897 = vpow.pop %v896
        %v898 = vmul.f32 %v782, 1.442695
        %v899 = vpow.pop %v898
        %v900 = vmul.f32 %v783, 1.442695
        %v901 = vpow.pop %v900
        %v902 = vmul.f32 %v784, 1.442695
        %v903 = vpow.pop %v902
        %v904 = vmul.f32 %v785, 1.442695
        %v905 = vpow.pop %v904
        %v906 = vmul.f32 %v786, 1.442695
        %v907 = vpow.pop %v906
        %v908 = vmul.f32 %v787, 1.442695
        %v909 = vpow.pop %v908
        %v910 = vmul.f32 %v788, 1.442695
        %v911 = vpow.pop %v910
        %v912 = vmul.f32 %v789, 1.442695
        %v913 = vpow.pop %v912
        %v914 = vmul.f32 %v790, 1.442695
        %v915 = vpow.pop %v914
        %v916 = vmul.f32 %v791, 1.442695
        %v917 = vpow.pop %v916
        %v918 = vmul.f32 %v792, 1.442695
        %v919 = vpow.pop %v918
        %v920 = vmul.f32 %v793, 1.442695
        %v921 = vpow.pop %v920
        %v922 = vadd.f32 %v795, %v799
        %v923 = vadd.f32 %v922, %v803
        %v924 = vadd.f32 %v923, %v807
        %v925 = vadd.f32 %v924, %v811
        %v926 = vadd.f32 %v925, %v815
        %v927 = vadd.f32 %v926, %v819
        %v928 = vadd.f32 %v927, %v823
        %v929 = vadd.f32 %v928, %v827
        %v930 = vadd.f32 %v929, %v831
        %v931 = vadd.f32 %v930, %v835
        %v932 = vadd.f32 %v931, %v839
        %v933 = vadd.f32 %v932, %v843
        %v934 = vadd.f32 %v933, %v847
        %v935 = vadd.f32 %v934, %v851
        %v936 = vadd.f32 %v935, %v855
        %v937 = vadd.f32 %v936, %v859
        %v938 = vadd.f32 %v937, %v863
        %v939 = vadd.f32 %v938, %v867
        %v940 = vadd.f32 %v939, %v871
        %v941 = vadd.f32 %v940, %v875
        %v942 = vadd.f32 %v941, %v879
        %v943 = vadd.f32 %v942, %v883
        %v944 = vadd.f32 %v943, %v887
        %v945 = vadd.f32 %v944, %v891
        %v946 = vadd.f32 %v945, %v895
        %v947 = vadd.f32 %v946, %v899
        %v948 = vadd.f32 %v947, %v903
        %v949 = vadd.f32 %v948, %v907
        %v950 = vadd.f32 %v949, %v911
        %v951 = vadd.f32 %v950, %v915
        %v952 = vadd.f32 %v951, %v919
        %v953 = vrot.slane %v952, 4
        %v954 = vadd.f32 %v952, %v953
        %v955 = vrot.slane %v954, 2
        %v956 = vadd.f32 %v954, %v955
        %v957 = vrot.slane %v956, 1
        %v958 = vadd.f32 %v956, %v957
        %v959 = vadd.f32 %v797, %v801
        %v960 = vadd.f32 %v959, %v805
        %v961 = vadd.f32 %v960, %v809
        %v962 = vadd.f32 %v961, %v813
        %v963 = vadd.f32 %v962, %v817
        %v964 = vadd.f32 %v963, %v821
        %v965 = vadd.f32 %v964, %v825
        %v966 = vadd.f32 %v965, %v829
        %v967 = vadd.f32 %v966, %v833
        %v968 = vadd.f32 %v967, %v837
        %v969 = vadd.f32 %v968, %v841
        %v970 = vadd.f32 %v969, %v845
        %v971 = vadd.f32 %v970, %v849
        %v972 = vadd.f32 %v971, %v853
        %v973 = vadd.f32 %v972, %v857
        %v974 = vadd.f32 %v973, %v861
        %v975 = vadd.f32 %v974, %v865
        %v976 = vadd.f32 %v975, %v869
        %v977 = vadd.f32 %v976, %v873
        %v978 = vadd.f32 %v977, %v877
        %v979 = vadd.f32 %v978, %v881
        %v980 = vadd.f32 %v979, %v885
        %v981 = vadd.f32 %v980, %v889
        %v982 = vadd.f32 %v981, %v893
        %v983 = vadd.f32 %v982, %v897
        %v984 = vadd.f32 %v983, %v901
        %v985 = vadd.f32 %v984, %v905
        %v986 = vadd.f32 %v985, %v909
        %v987 = vadd.f32 %v986, %v913
        %v988 = vadd.f32 %v987, %v917
        %v989 = vadd.f32 %v988, %v921
        %v990 = vrot.slane %v989, 4
        %v991 = vadd.f32 %v989, %v990
        %v992 = vrot.slane %v991, 2
        %v993 = vadd.f32 %v991, %v992
        %v994 = vrot.slane %v993, 1
        %v995 = vadd.f32 %v993, %v994
        %v996 = vpack.c.bf16 %v799, %v795
        %v997 = vpack.c.bf16 %v801, %v797
        %v998 = vpack.c.bf16 %v807, %v803
        %v999 = vpack.c.bf16 %v809, %v805
        %v1000 = vpack.c.bf16 %v815, %v811
        %v1001 = vpack.c.bf16 %v817, %v813
        %v1002 = vpack.c.bf16 %v823, %v819
        %v1003 = vpack.c.bf16 %v825, %v821
        %v1004 = vpack.c.bf16 %v831, %v827
        %v1005 = vpack.c.bf16 %v833, %v829
        %v1006 = vpack.c.bf16 %v839, %v835
        %v1007 = vpack.c.bf16 %v841, %v837
        %v1008 = vpack.c.bf16 %v847, %v843
        %v1009 = vpack.c.bf16 %v849, %v845
        %v1010 = vpack.c.bf16 %v855, %v851
        %v1011 = vpack.c.bf16 %v857, %v853
        %v1012 = vpack.c.bf16 %v863, %v859
        %v1013 = vpack.c.bf16 %v865, %v861
        %v1014 = vpack.c.bf16 %v871, %v867
        %v1015 = vpack.c.bf16 %v873, %v869
        %v1016 = vpack.c.bf16 %v879, %v875
        %v1017 = vpack.c.bf16 %v881, %v877
        %v1018 = vpack.c.bf16 %v887, %v883
        %v1019 = vpack.c.bf16 %v889, %v885
        %v1020 = vpack.c.bf16 %v895, %v891
        %v1021 = vpack.c.bf16 %v897, %v893
        %v1022 = vpack.c.bf16 %v903, %v899
        %v1023 = vpack.c.bf16 %v905, %v901
        %v1024 = vpack.c.bf16 %v911, %v907
        %v1025 = vpack.c.bf16 %v913, %v909
        %v1026 = vpack.c.bf16 %v919, %v915
        %v1027 = vpack.c.bf16 %v921, %v917
        %1028 = vmatprep.subr.bf16.mxu0 %v997
        %1029 = vmatpush1.bf16.msra.mxu0 %v996
        %1030 = vmatprep.subr.bf16.mxu0 %v999
        %1031 = vmatpush1.bf16.msra.mxu0 %v998
        %1032 = vmatprep.subr.bf16.mxu0 %v1001
        %1033 = vmatpush1.bf16.msra.mxu0 %v1000
        %1034 = vmatprep.subr.bf16.mxu0 %v1003
        %1035 = vmatpush1.bf16.msra.mxu0 %v1002
        %1036 = vmatprep.subr.bf16.mxu0 %v1005
        %1037 = vmatpush1.bf16.msra.mxu0 %v1004
        %1038 = vmatprep.subr.bf16.mxu0 %v1007
        %1039 = vmatpush1.bf16.msra.mxu0 %v1006
        %1040 = vmatprep.subr.bf16.mxu0 %v1009
        %1041 = vmatpush1.bf16.msra.mxu0 %v1008
        %1042 = vmatprep.subr.bf16.mxu0 %v1011
        %1043 = vmatpush1.bf16.msra.mxu0 %v1010
        %1044 = vmatprep.subr.bf16.mxu0 %v1013
        %1045 = vmatpush1.bf16.msra.mxu0 %v1012
        %1046 = vmatprep.subr.bf16.mxu0 %v1015
        %1047 = vmatpush1.bf16.msra.mxu0 %v1014
        %1048 = vmatprep.subr.bf16.mxu0 %v1017
        %1049 = vmatpush1.bf16.msra.mxu0 %v1016
        %1050 = vmatprep.subr.bf16.mxu0 %v1019
        %1051 = vmatpush1.bf16.msra.mxu0 %v1018
        %1052 = vmatprep.subr.bf16.mxu0 %v1021
        %1053 = vmatpush1.bf16.msra.mxu0 %v1020
        %1054 = vmatprep.subr.bf16.mxu0 %v1023
        %1055 = vmatpush1.bf16.msra.mxu0 %v1022
        %1056 = vmatprep.subr.bf16.mxu0 %v1025
        %1057 = vmatpush1.bf16.msra.mxu0 %v1024
        %1058 = vmatprep.subr.bf16.mxu0 %v1027
        %1059 = vmatpush1.bf16.msra.mxu0 %v1026
        %1060 = vmatprep.mubr.bf16.mxu0 %v355
        %1061 = vmatmul.mubr.bf16.gmra.mrb[0].mxu0 %v354
        %v1062 = vpop.f32.mrb[0].mxu0
        %v1063 = vadd.f32 0.0, %v1062
        %v1064 = vpop.f32.mrb[0].mxu0
        %v1065 = vadd.f32 0.0, %v1064
        %v1066 = vpop.f32.mrb[0].mxu0
        %v1067 = vadd.f32 0.0, %v1066
        %v1068 = vpop.f32.mrb[0].mxu0
        %v1069 = vadd.f32 0.0, %v1068
        %1070 = vmatprep.mubr.bf16.mxu0 %v357
        %1071 = vmatmul.mubr.bf16.gmra.mrb[0].mxu0 %v356
        %v1072 = vpop.f32.mrb[0].mxu0
        %v1073 = vadd.f32 0.0, %v1072
        %v1074 = vpop.f32.mrb[0].mxu0
        %v1075 = vadd.f32 0.0, %v1074
        %v1076 = vpop.f32.mrb[0].mxu0
        %v1077 = vadd.f32 0.0, %v1076
        %v1078 = vpop.f32.mrb[0].mxu0
        %v1079 = vadd.f32 0.0, %v1078
        %1080 = vdwg.mxu0
        %v1081 = vrcp.pop %v958
        %v1082 = vrcp.pop %v995
        %v1083 = vmul.f32 %v1063, %v1081
        %v1084 = vmul.f32 %v1065, %v1082
        %v1085 = vmul.f32 %v1067, %v1081
        %v1086 = vmul.f32 %v1069, %v1082
        %v1087 = vmul.f32 %v1073, %v1081
        %v1088 = vmul.f32 %v1075, %v1082
        %v1089 = vmul.f32 %v1077, %v1081
        %v1090 = vmul.f32 %v1079, %v1082
        %v1091 = vpack.c.bf16 %v1085, %v1083
        %v1092 = vpack.c.bf16 %v1086, %v1084
        %v1093 = vpack.c.bf16 %v1089, %v1087
        %v1094 = vpack.c.bf16 %v1090, %v1088
        %v1095 = vld [vmem:[#allocation8] sm:$0xf]
        %v1096 = vld [vmem:[#allocation8 + $0x4] sm:$0xf]
        %v1097 = vld [vmem:[#allocation8 + $0x8] sm:$0xf]
        %v1098 = vld [vmem:[#allocation8 + $0xc] sm:$0xf]
        %v1099 = vld [vmem:[%s291] sm:$0xff]
        %v1100 = vld [vmem:[%s291 + $0x8] sm:$0xff]
        %v1101 = vld [vmem:[%s291 + $0x10] sm:$0xff]
        %v1102 = vld [vmem:[%s291 + $0x18] sm:$0xff]
        %v1103 = vld [vmem:[%s291 + $0x20] sm:$0xff]
        %v1104 = vld [vmem:[%s291 + $0x28] sm:$0xff]
        %v1105 = vld [vmem:[%s291 + $0x30] sm:$0xff]
        %v1106 = vld [vmem:[%s291 + $0x38] sm:$0xff]
        %v1111 = vunpack.c.l.b16 %v1095
        %v1112 = vunpack.c.l.b16 %v1096
        %v1113 = vunpack.c.l.b16 %v1097
        %v1114 = vunpack.c.l.b16 %v1098
        %v1115 = vpack.c.b16 %v1112, %v1111
        %v1116 = vpack.c.b16 %v1114, %v1113
        %v1118 = vsel %vm414, %v1115, 0
        %v1121 = vsel %vm414, %v1116, 0
        %1123 = vmatprep.subr.bf16.mxu0 %v1092
        %1124 = vmatpush1.bf16.msra.mxu0 %v1091
        %1125 = vmatprep.subr.bf16.mxu0 %v1094
        %1126 = vmatpush1.bf16.msra.mxu0 %v1093
        %1127 = vmatprep.subr.bf16.mxu0 0
        %1128 = vmatpush1.bf16.msra.mxu0 0
        %1129 = vmatprep.subr.bf16.mxu0 0
        %1130 = vmatpush1.bf16.msra.mxu0 0
        %1131 = vmatprep.subr.bf16.mxu0 0
        %1132 = vmatpush1.bf16.msra.mxu0 0
        %1133 = vmatprep.subr.bf16.mxu0 0
        %1134 = vmatpush1.bf16.msra.mxu0 0
        %1135 = vmatprep.subr.bf16.mxu0 0
        %1136 = vmatpush1.bf16.msra.mxu0 0
        %1137 = vmatprep.subr.bf16.mxu0 0
        %1138 = vmatpush1.bf16.msra.mxu0 0
        %1139 = vmatprep.subr.bf16.mxu0 0
        %1140 = vmatpush1.bf16.msra.mxu0 0
        %1141 = vmatprep.subr.bf16.mxu0 0
        %1142 = vmatpush1.bf16.msra.mxu0 0
        %1143 = vmatprep.subr.bf16.mxu0 0
        %1144 = vmatpush1.bf16.msra.mxu0 0
        %1145 = vmatprep.subr.bf16.mxu0 0
        %1146 = vmatpush1.bf16.msra.mxu0 0
        %1147 = vmatprep.subr.bf16.mxu0 0
        %1148 = vmatpush1.bf16.msra.mxu0 0
        %1149 = vmatprep.subr.bf16.mxu0 0
        %1150 = vmatpush1.bf16.msra.mxu0 0
        %1151 = vmatprep.subr.bf16.mxu0 0
        %1152 = vmatpush1.bf16.msra.mxu0 0
        %1153 = vmatprep.subr.bf16.mxu0 0
        %1154 = vmatpush1.bf16.msra.mxu0 0
        %1155 = vmatprep.mubr.bf16.mxu0 0
        %1156 = vmatmul.mubr.bf16.gmra.mrb[0].mxu0 %v1118
        %v1157 = vpop.f32.mrb[0].mxu0
        %v1158 = vadd.f32 %v1099, %v1157
        %v1159 = vpop.f32.mrb[0].mxu0
        %v1160 = vadd.f32 %v1100, %v1159
        %v1161 = vpop.f32.mrb[0].mxu0
        %v1162 = vadd.f32 %v1101, %v1161
        %v1163 = vpop.f32.mrb[0].mxu0
        %v1164 = vadd.f32 %v1102, %v1163
        %1165 = vmatprep.mubr.bf16.mxu0 0
        %1166 = vmatmul.mubr.bf16.gmra.mrb[0].mxu0 %v1121
        %v1167 = vpop.f32.mrb[0].mxu0
        %v1168 = vadd.f32 %v1103, %v1167
        %v1169 = vpop.f32.mrb[0].mxu0
        %v1170 = vadd.f32 %v1104, %v1169
        %v1171 = vpop.f32.mrb[0].mxu0
        %v1172 = vadd.f32 %v1105, %v1171
        %v1173 = vpop.f32.mrb[0].mxu0
        %v1174 = vadd.f32 %v1106, %v1173
        %1175 = vdwg.mxu0
        %1176 = vst [vmem:[%s329] sm:$0xff] %v1158
        %1177 = vst [vmem:[%s329 + $0x8] sm:$0xff] %v1160
        %1178 = vst [vmem:[%s329 + $0x10] sm:$0xff] %v1162
        %1179 = vst [vmem:[%s329 + $0x18] sm:$0xff] %v1164
        %1180 = vst [vmem:[%s329 + $0x20] sm:$0xff] %v1168
        %1181 = vst [vmem:[%s329 + $0x28] sm:$0xff] %v1170
        %1182 = vst [vmem:[%s329 + $0x30] sm:$0xff] %v1172
        %1183 = vst [vmem:[%s329 + $0x38] sm:$0xff] %v1174
        %s1184 = sand.u32 %s150, 1
        %s1185 = scalar_lea.sflag [#allocation4], %s1184
        %s1186 = sand.u32 %s150, 1
        %s1187 = smul.addr %s1186, 64
        %s1188 = scalar_lea.vmem [#allocation10], %s1187
        // Predicated region
        $region53: #{tpu_custom_call.1} parent=35 // pred_check
          %p1189 = pneg %p160
        $region54: #{tpu_custom_call.1} parent=35 // pred_check_branch
          %1191 = sbr.rel (%p1189) target = $region56
        $region55: #{tpu_custom_call.1} parent=35 // pred_region
          %s1192 = smul.u32 2, %s30
          %s1194 = ssub.s32 1024, 1024
          %1195 = vsyncadd %s1185, %s1194
          %s1196 = smul.addr %s29, 8
          %s1197 = sadd.s32 %s1192, %s1196
          %s1198 = smul.addr %s1197, 128
          %s1199 = scalar_lea.hbm %s4, %s1198
          %s1200 = sshll.u32 %s1188, 4
          %s1201 = int_to_ptr.vmem [resolvable:$true] %s1200
          %1206 = dma.vmem_to_hbm [thread:$0]  %s1201, 1024, %s1199, %s1185, 256, 256, 16
        $region56: #{tpu_custom_call.1} parent=35 // pred_fallthru
          _
      $region36: #{tpu_custom_call.1} parent=5 // pred_fallthru
        _
      %p1207 = scmp.le.s32.totalorder 2, %s20
      // Predicated region
      $region57: #{tpu_custom_call.1} parent=5 // pred_check
        %p1208 = pneg %p1207
      $region58: #{tpu_custom_call.1} parent=5 // pred_check_branch
        %1210 = sbr.rel (%p1208) target = $region60
      $region59: #{tpu_custom_call.1} parent=5 // pred_region
        %s1211 = ssub.s32 %s20, 2
        // Predicated region
        $region61: #{tpu_custom_call.1} parent=59 // pred_check
          %p1212 = pneg %p166
        $region62: #{tpu_custom_call.1} parent=59 // pred_check_branch
          %1214 = sbr.rel (%p1212) target = $region64
        $region63: #{tpu_custom_call.1} parent=59 // pred_region
          %s1215 = sand.u32 %s151, 1
          %s1216 = scalar_lea.sflag [#allocation4], %s1215
          %s1217 = sand.u32 %s151, 1
          %s1218 = smul.addr %s1217, 64
          %s1219 = scalar_lea.vmem [#allocation10], %s1218
          %1220 = dma.done %s1216, 1024
        $region64: #{tpu_custom_call.1} parent=59 // pred_fallthru
          _
      $region60: #{tpu_custom_call.1} parent=5 // pred_fallthru
        _
    $region6: #{tpu_custom_call.1} parent=1 // loop_footer
      %s24 = sadd.s32 1, %s20
    $region7: #{tpu_custom_call.1} parent=1 // loop_footer_branch
      %19 = sbr.rel target = $region3
    $region8: #{tpu_custom_call.1} parent=1 // loop_exit
      _
    %1221 = vsyncpa [#allocation3], 1
    %s1222 = scalar_lea.sflag [#allocation3], 1
    %1223 = vsyncpa %s1222, 1
    %1224 = vsyncpa [#allocation6], 1
    %s1225 = scalar_lea.sflag [#allocation6], 1
    %1226 = vsyncpa %s1225, 1
    %1227 = vsyncpa [#allocation9], 1
    %1228 = vsyncpa [#allocation4], 1
    %s1229 = scalar_lea.sflag [#allocation4], 1
    %1230 = vsyncpa %s1229, 1

</llo_original>
